<compile_context>
chip_gen: v7x
topology: tpu7x:2x2x1
jax: 0.10.0
libtpu: 0.0.40
codegen_flags: <defaults>
</compile_context>

<pallas_src>
import math
import functools

import jax
import jax.numpy as jnp
from jax import lax
from jax.experimental import pallas as pl
from jax.experimental.pallas import tpu as pltpu


_INV_SQRT2 = 1.0 / math.sqrt(2.0)
_LN_EPS = 1e-5                       # nn.LayerNorm default


@functools.lru_cache(maxsize=None)
def _vmem_limit_bytes():
    """~100 MiB on 128-MiB parts (v5e/v6e), 48 MiB on 64-MiB parts (v7x)."""
    phys = 64 * 1024 * 1024
    try:
        phys = int(getattr(pltpu.get_tpu_info(), "vmem_capacity_bytes", phys))
    except Exception:
        pass
    return 100 * 1024 * 1024 if phys >= 128 * 1024 * 1024 else 48 * 1024 * 1024


def _pick(dim, candidates):
    """Largest candidate tile that divides `dim`, else the full dim."""
    for c in candidates:
        if dim >= c and dim % c == 0:
            return c
    return dim


# tm up to 1024 (cuts weight re-streaming linearly); tn multiples of 256
# preferred (768 = 3x256) so v6e/v7x MXU passes are full; tk as large as divides.
_TM_CANDS = (1024, 512, 256, 128, 64, 32, 16, 8)
_TN_CANDS = (1024, 768, 512, 256, 128)
_TK_CANDS = (2048, 1536, 1024, 768, 512, 256, 128)
_TQ_CANDS = (512, 256, 128, 64, 32, 16, 8)


# --------------------------------------------------------------------------
# LayerNorm kernel (computed once per row, not per matmul N-tile)
# --------------------------------------------------------------------------

def _ln_kernel(x_ref, g_ref, b_ref, o_ref):
    x = x_ref[...].astype(jnp.float32)
    mu = jnp.mean(x, axis=-1, keepdims=True)
    xc = x - mu
    var = jnp.mean(xc * xc, axis=-1, keepdims=True)
    y = xc * lax.rsqrt(var + _LN_EPS) * g_ref[...] + b_ref[...]
    o_ref[...] = y.astype(o_ref.dtype)


def layernorm(x, gamma, beta, out_dtype=jnp.bfloat16):
    M, C = x.shape
    tm = _pick(M, _TM_CANDS)
    return pl.pallas_call(
        _ln_kernel,
        out_shape=jax.ShapeDtypeStruct((M, C), out_dtype),
        grid=(M // tm,),
        in_specs=[pl.BlockSpec((tm, C), lambda i: (i, 0)),
                  pl.BlockSpec((1, C), lambda i: (0, 0)),
                  pl.BlockSpec((1, C), lambda i: (0, 0))],
        out_specs=pl.BlockSpec((tm, C), lambda i: (i, 0)),
        compiler_params=pltpu.CompilerParams(
            dimension_semantics=("parallel",),
            vmem_limit_bytes=_vmem_limit_bytes()),
    )(x, gamma.reshape(1, C).astype(jnp.float32),
      beta.reshape(1, C).astype(jnp.float32))


# --------------------------------------------------------------------------
# Tiled matmul with fused bias / exact GELU / residual epilogue
# --------------------------------------------------------------------------

def _make_matmul_kernel(*, has_bias, act, has_residual, single_k):
    def kernel(*refs):
        it = iter(refs)
        x_ref = next(it)
        w_ref = next(it)
        bias_ref = next(it) if has_bias else None
        res_ref = next(it) if has_residual else None
        o_ref = next(it)
        acc_ref = None if single_k else next(it)

        def epilogue(r):
            if has_bias:
                r = r + bias_ref[...].astype(jnp.float32)
            if act == "gelu":
                # Exact (erf) GELU, matching torch.nn.GELU() default.
                r = 0.5 * r * (1.0 + lax.erf(r * _INV_SQRT2))
            if has_residual:
                r = r + res_ref[...].astype(jnp.float32)
            o_ref[...] = r.astype(o_ref.dtype)

        part = jnp.dot(x_ref[...].astype(jnp.bfloat16),
                       w_ref[...].astype(jnp.bfloat16),
                       preferred_element_type=jnp.float32)

        if single_k:
            # No K reduction to carry -> skip the f32 accumulator entirely.
            epilogue(part)
        else:
            k = pl.program_id(2)

            @pl.when(k == 0)
            def _init():
                acc_ref[...] = jnp.zeros_like(acc_ref)

            acc_ref[...] += part

            @pl.when(k == pl.num_programs(2) - 1)
            def _finalize():
                epilogue(acc_ref[...])

    return kernel


def fused_matmul(x, w, *, bias=None, residual=None, act=None,
                 out_dtype=jnp.bfloat16):
    """out = [residual +] act(x @ W [+ bias]) with a tiled, pipelined matmul."""
    M, K = x.shape
    K2, N = w.shape
    assert K2 == K
    tm = _pick(M, _TM_CANDS)
    tn = _pick(N, _TN_CANDS)
    tk = _pick(K, _TK_CANDS)
    grid = (M // tm, N // tn, K // tk)
    single_k = (grid[2] == 1)

    in_specs = [pl.BlockSpec((tm, tk), lambda i, j, k: (i, k)),
                pl.BlockSpec((tk, tn), lambda i, j, k: (k, j))]
    inputs = [x, w]
    if bias is not None:
        in_specs.append(pl.BlockSpec((1, tn), lambda i, j, k: (0, j)))
        inputs.append(bias.reshape(1, N).astype(jnp.float32))
    if residual is not None:
        in_specs.append(pl.BlockSpec((tm, tn), lambda i, j, k: (i, j)))
        inputs.append(residual)

    kernel = _make_matmul_kernel(has_bias=bias is not None, act=act,
                                 has_residual=residual is not None,
                                 single_k=single_k)

    out_bytes = jnp.dtype(out_dtype).itemsize
    cost = pl.CostEstimate(
        flops=2 * M * N * K,
        transcendentals=(M * N if act == "gelu" else 0),
        bytes_accessed=int(x.size * x.dtype.itemsize * (N // tn)
                           + w.size * w.dtype.itemsize * (M // tm)
                           + M * N * out_bytes))

    return pl.pallas_call(
        kernel,
        out_shape=jax.ShapeDtypeStruct((M, N), out_dtype),
        grid=grid,
        in_specs=in_specs,
        out_specs=pl.BlockSpec((tm, tn), lambda i, j, k: (i, j)),
        scratch_shapes=([] if single_k else [pltpu.VMEM((tm, tn), jnp.float32)]),
        compiler_params=pltpu.CompilerParams(
            dimension_semantics=("parallel", "parallel", "arbitrary"),
            vmem_limit_bytes=_vmem_limit_bytes()),
        cost_estimate=cost,
    )(*inputs)


# --------------------------------------------------------------------------
# Flash-attention style causal attention
#   grid = (B, T/tq, T/tkv); heads batched in one einsum; lane-dense output
# --------------------------------------------------------------------------

def _make_flash_kernel(*, num_heads, head_dim, tq, tkv, scale):
    H, D = num_heads, head_dim

    def kernel(q_ref, k_ref, v_ref, o_ref, m_sc, l_sc, acc_sc):
        # q_ref: (tq, H, D)  k_ref/v_ref: (tkv, H, D)  o_ref: (tq, H*D)
        qi = pl.program_id(1)
        ki = pl.program_id(2)

        @pl.when(ki == 0)
        def _init():
            m_sc[...] = jnp.full(m_sc.shape, -1e30, dtype=jnp.float32)
            l_sc[...] = jnp.zeros(l_sc.shape, dtype=jnp.float32)
            acc_sc[...] = jnp.zeros(acc_sc.shape, dtype=jnp.float32)

        # Causal tile skip (the K/V index maps clamp the DMA of skipped tiles).
        @pl.when(ki * tkv <= qi * tq + (tq - 1))
        def _compute():
            q = jnp.swapaxes(q_ref[...], 0, 1)   # (H, tq, D)
            k = jnp.swapaxes(k_ref[...], 0, 1)   # (H, tkv, D)
            v = jnp.swapaxes(v_ref[...], 0, 1)   # (H, tkv, D)

            s = jnp.einsum("hqd,hkd->hqk", q, k,
                           preferred_element_type=jnp.float32) * scale
            rows = qi * tq + lax.broadcasted_iota(jnp.int32, (tq, tkv), 0)
            cols = ki * tkv + lax.broadcasted_iota(jnp.int32, (tq, tkv), 1)
            s = jnp.where((cols <= rows)[None, :, :], s, -1e30)

            m_prev = m_sc[...]
            m_new = jnp.maximum(m_prev, jnp.max(s, axis=-1, keepdims=True))
            alpha = jnp.exp(m_prev - m_new)
            p = jnp.exp(s - m_new)
            l_sc[...] = alpha * l_sc[...] + jnp.sum(p, axis=-1, keepdims=True)
            m_sc[...] = m_new
            acc_sc[...] = alpha * acc_sc[...] + jnp.einsum(
                "hqk,hkd->hqd", p.astype(jnp.bfloat16), v,
                preferred_element_type=jnp.float32)

        @pl.when(ki == pl.num_programs(2) - 1)
        def _finalize():
            out = acc_sc[...] / l_sc[...]                       # exact softmax norm
            out = jnp.swapaxes(out, 0, 1).reshape(tq, H * D)    # lane-dense (tq, C)
            o_ref[...] = out.astype(o_ref.dtype)

    return kernel


def flash_attention(qkv):
    """qkv: (B, T, 3, H, D) bf16 -> (B, T, H*D) bf16, causal attention."""
    B, T, three, H, D = qkv.shape
    assert three == 3
    tq = _pick(T, _TQ_CANDS)
    tkv = _pick(T, _TQ_CANDS)
    grid = (B, T // tq, T // tkv)
    scale = 1.0 / math.sqrt(D)

    def last_needed_kv(qi):
        return (qi * tq + (tq - 1)) // tkv

    # QKV split + head selection purely through index maps (no HBM transposes).
    q_spec = pl.BlockSpec((None, tq, None, H, D),
                          lambda b, qi, ki: (b, qi, 0, 0, 0))
    # Clamp to the last causally-needed kv tile: skipped upper-triangular tiles
    # map to the same block index as the previous step, so no DMA is issued.
    k_spec = pl.BlockSpec(
        (None, tkv, None, H, D),
        lambda b, qi, ki: (b, jnp.minimum(ki, last_needed_kv(qi)), 1, 0, 0))
    v_spec = pl.BlockSpec(
        (None, tkv, None, H, D),
        lambda b, qi, ki: (b, jnp.minimum(ki, last_needed_kv(qi)), 2, 0, 0))
    o_spec = pl.BlockSpec((None, tq, H * D), lambda b, qi, ki: (b, qi, 0))

    cost = pl.CostEstimate(
        flops=2 * B * H * T * T * D,                  # causal ~half of full 4*B*H*T*T*D
        transcendentals=B * H * T * T // 2,
        bytes_accessed=int(qkv.size * qkv.dtype.itemsize + B * T * H * D * 2))

    kernel = _make_flash_kernel(num_heads=H, head_dim=D, tq=tq, tkv=tkv,
                                scale=scale)

    return pl.pallas_call(
        kernel,
        out_shape=jax.ShapeDtypeStruct((B, T, H * D), jnp.bfloat16),
        grid=grid,
        in_specs=[q_spec, k_spec, v_spec],
        out_specs=o_spec,
        # TODO(synk): m/l are (H, tq, 1) (sub-128-lane) scratch; a lane-aligned
        # stats layout is a further micro-opt.
        scratch_shapes=[pltpu.VMEM((H, tq, 1), jnp.float32),   # running max
                        pltpu.VMEM((H, tq, 1), jnp.float32),   # running sum
                        pltpu.VMEM((H, tq, D), jnp.float32)],  # accumulator
        compiler_params=pltpu.CompilerParams(
            dimension_semantics=("parallel", "parallel", "arbitrary"),
            vmem_limit_bytes=_vmem_limit_bytes()),
        cost_estimate=cost,
    )(qkv, qkv, qkv)


# --------------------------------------------------------------------------
# Parameters (GPT-2 init; weights bf16, LN params / biases f32)
# --------------------------------------------------------------------------

def init_params(key, cfg):
    V, S, L, C = cfg["vocab_size"], cfg["block_size"], cfg["n_layer"], cfg["n_embd"]
    std = 0.02
    scale_std = 0.02 * (2 * L) ** (-0.5)   # NANOGPT_SCALE_INIT layers
    # Pad vocab to a lane multiple so the lm_head N axis always tiles.
    # TODO(synk): pad to a multiple of 256/1024 for real vocab sizes to better
    # fill the v6e/v7x MXU and enable larger tn.
    V_pad = ((V + 127) // 128) * 128

    keys = iter(jax.random.split(key, 2 + 4 * L))

    def w_init(k, shape, s):
        return (s * jax.random.normal(k, shape, jnp.float32)).astype(jnp.bfloat16)

    wte = w_init(next(keys), (V, C), std)
    # One-time (C, V_pad) transposed copy of the tied embedding for lm_head:
    # no per-tile weight transpose on the hottest, memory-bound matmul.
    lm_head_w = jnp.zeros((C, V_pad), jnp.bfloat16).at[:, :V].set(wte.T)

    params = {
        "wte": wte,
        "lm_head_w": lm_head_w,
        "wpe": w_init(next(keys), (S, C), std),
        "ln_f_g": jnp.ones((C,), jnp.float32),
        "ln_f_b": jnp.zeros((C,), jnp.float32),
        "blocks": [],
    }
    for _ in range(L):
        params["blocks"].append({
            "ln1_g": jnp.ones((C,), jnp.float32),
            "ln1_b": jnp.zeros((C,), jnp.float32),
            # linear weights stored pre-transposed: (in, out)
            "attn_w": w_init(next(keys), (C, 3 * C), std),
            "attn_b": jnp.zeros((3 * C,), jnp.float32),
            "proj_w": w_init(next(keys), (C, C), scale_std),
            "proj_b": jnp.zeros((C,), jnp.float32),
            "ln2_g": jnp.ones((C,), jnp.float32),
            "ln2_b": jnp.zeros((C,), jnp.float32),
            "fc_w": w_init(next(keys), (C, 4 * C), std),
            "fc_b": jnp.zeros((4 * C,), jnp.float32),
            "mlp_proj_w": w_init(next(keys), (4 * C, C), scale_std),
            "mlp_proj_b": jnp.zeros((C,), jnp.float32),
        })
    return params


# --------------------------------------------------------------------------
# Forward pass
# --------------------------------------------------------------------------

def gpt2_forward(params, idx, cfg):
    B, T = idx.shape
    C, H, V = cfg["n_embd"], cfg["n_head"], cfg["vocab_size"]
    D = C // H
    assert T <= cfg["block_size"]
    M = B * T

    # TODO(synk): token/position embedding gather + add left to XLA (jnp.take).
    tok = jnp.take(params["wte"], idx, axis=0)            # (B, T, C) bf16
    pos = params["wpe"][:T]                               # (T, C)    bf16
    x = (tok + pos[None, :, :]).astype(jnp.bfloat16).reshape(M, C)

    for blk in params["blocks"]:
        # ---- attention: LN1 -> c_attn -> flash attention -> c_proj + residual ----
        h = layernorm(x, blk["ln1_g"], blk["ln1_b"])
        qkv = fused_matmul(h, blk["attn_w"], bias=blk["attn_b"])     # (M, 3C)
        y = flash_attention(qkv.reshape(B, T, 3, H, D))              # (B, T, C) lane-dense
        x = fused_matmul(y.reshape(M, C), blk["proj_w"],
                         bias=blk["proj_b"], residual=x)

        # ---- MLP: LN2 -> fc -> GELU -> proj + residual ----
        h = layernorm(x, blk["ln2_g"], blk["ln2_b"])
        h = fused_matmul(h, blk["fc_w"], bias=blk["fc_b"], act="gelu")   # (M, 4C)
        x = fused_matmul(h, blk["mlp_proj_w"], bias=blk["mlp_proj_b"],
                         residual=x)

    # ---- ln_f + tied lm_head (vocab-padded weight, sliced back to V) ----
    xf = layernorm(x, params["ln_f_g"], params["ln_f_b"])
    logits = fused_matmul(xf, params["lm_head_w"], out_dtype=jnp.float32)  # (M, V_pad)
    logits = logits[:, :V].reshape(B, T, V)
    # TODO(synk): cross-entropy loss path (targets is not None) not implemented;
    # forward with targets=None returns (logits, None), matching the reference.
    return logits, None


# --------------------------------------------------------------------------
# Main
# --------------------------------------------------------------------------

if __name__ == "__main__":
    cfg = dict(vocab_size=128, block_size=16, n_layer=2, n_head=4, n_embd=32)
    B, T = 2, 8

    key = jax.random.PRNGKey(0)
    k_param, k_idx = jax.random.split(key)
    params = init_params(k_param, cfg)
    idx = jax.random.randint(k_idx, (B, T), 0, cfg["vocab_size"], dtype=jnp.int32)

    logits, loss = gpt2_forward(params, idx, cfg)
    logits = jax.block_until_ready(logits)

    assert logits.shape == (B, T, cfg["vocab_size"])
    assert jnp.all(jnp.isfinite(logits))
    print("KERNEL_OK")
</pallas_src>

<mosaic_0001>
module attributes {stable_mosaic.version = 11 : i64} {
  func.func @_ln_kernel(%arg0: i32, %arg1: memref<16x32xbf16, #tpu.memory_space<vmem>>, %arg2: memref<1x32xf32, #tpu.memory_space<vmem>>, %arg3: memref<1x32xf32, #tpu.memory_space<vmem>>, %arg4: memref<16x32xbf16, #tpu.memory_space<vmem>>) attributes {dimension_semantics = [#tpu.dimension_semantics<parallel>], iteration_bounds = array<i64: 1>, scalar_prefetch = 0 : i64, scratch_operands = 0 : i64, tpu.core_type = #tpu.core_type<tc>, window_params = [{transform_indices = @transform_0, window_bounds = array<i64: 16, 32>}, {pipeline_mode = #tpu.pipeline_mode<synchronous>, transform_indices = @transform_1, window_bounds = array<i64: 1, 32>}, {pipeline_mode = #tpu.pipeline_mode<synchronous>, transform_indices = @transform_2, window_bounds = array<i64: 1, 32>}, {transform_indices = @transform_3, window_bounds = array<i64: 16, 32>}]} {
    %c0 = arith.constant 0 : index
    %c0_0 = arith.constant 0 : index
    %0 = vector.load %arg1[%c0, %c0_0] : memref<16x32xbf16, #tpu.memory_space<vmem>>, vector<16x32xbf16>
    %1 = arith.extf %0 : vector<16x32xbf16> to vector<16x32xf32>
    %cst = arith.constant dense<0.000000e+00> : vector<16xf32>
    %2 = vector.multi_reduction <add>, %1, %cst [1] : vector<16x32xf32> to vector<16xf32>
    %3 = vector.shape_cast %2 : vector<16xf32> to vector<16x1xf32>
    %cst_1 = arith.constant 3.200000e+01 : f32
    %4 = vector.broadcast %cst_1 : f32 to vector<16x1xf32>
    %5 = arith.divf %3, %4 : vector<16x1xf32>
    %6 = vector.broadcast %5 : vector<16x1xf32> to vector<16x32xf32>
    %7 = arith.subf %1, %6 : vector<16x32xf32>
    %8 = arith.mulf %7, %7 : vector<16x32xf32>
    %cst_2 = arith.constant dense<0.000000e+00> : vector<16xf32>
    %9 = vector.multi_reduction <add>, %8, %cst_2 [1] : vector<16x32xf32> to vector<16xf32>
    %10 = vector.shape_cast %9 : vector<16xf32> to vector<16x1xf32>
    %cst_3 = arith.constant 3.200000e+01 : f32
    %11 = vector.broadcast %cst_3 : f32 to vector<16x1xf32>
    %12 = arith.divf %10, %11 : vector<16x1xf32>
    %cst_4 = arith.constant 9.99999974E-6 : f32
    %13 = vector.broadcast %cst_4 : f32 to vector<16x1xf32>
    %14 = arith.addf %12, %13 : vector<16x1xf32>
    %15 = math.rsqrt %14 : vector<16x1xf32>
    %16 = vector.broadcast %15 : vector<16x1xf32> to vector<16x32xf32>
    %17 = arith.mulf %7, %16 : vector<16x32xf32>
    %c0_5 = arith.constant 0 : index
    %c0_6 = arith.constant 0 : index
    %18 = vector.load %arg2[%c0_5, %c0_6] : memref<1x32xf32, #tpu.memory_space<vmem>>, vector<1x32xf32>
    %19 = vector.broadcast %18 : vector<1x32xf32> to vector<16x32xf32>
    %20 = arith.mulf %17, %19 : vector<16x32xf32>
    %c0_7 = arith.constant 0 : index
    %c0_8 = arith.constant 0 : index
    %21 = vector.load %arg3[%c0_7, %c0_8] : memref<1x32xf32, #tpu.memory_space<vmem>>, vector<1x32xf32>
    %22 = vector.broadcast %21 : vector<1x32xf32> to vector<16x32xf32>
    %23 = arith.addf %20, %22 : vector<16x32xf32>
    %24 = arith.truncf %23 : vector<16x32xf32> to vector<16x32xbf16>
    %c0_9 = arith.constant 0 : index
    %c0_10 = arith.constant 0 : index
    %25 = vector.load %arg4[%c0_9, %c0_10] : memref<16x32xbf16, #tpu.memory_space<vmem>>, vector<16x32xbf16>
    tpu.vector_store %arg4[%c0_9, %c0_10], %24 {strides = array<i32>} : memref<16x32xbf16, #tpu.memory_space<vmem>>, vector<16x32xbf16>,
    return
  }
  func.func @transform_0(%arg0: i32) -> (i32, i32) {
    %c0_i32 = arith.constant 0 : i32
    %c0_i32_0 = arith.constant 0 : i32
    return %arg0, %c0_i32 : i32, i32
  }
  func.func @transform_1(%arg0: i32) -> (i32, i32) {
    %c0_i32 = arith.constant 0 : i32
    %c0_i32_0 = arith.constant 0 : i32
    %c0_i32_1 = arith.constant 0 : i32
    return %c0_i32, %c0_i32_0 : i32, i32
  }
  func.func @transform_2(%arg0: i32) -> (i32, i32) {
    %c0_i32 = arith.constant 0 : i32
    %c0_i32_0 = arith.constant 0 : i32
    %c0_i32_1 = arith.constant 0 : i32
    return %c0_i32, %c0_i32_0 : i32, i32
  }
  func.func @transform_3(%arg0: i32) -> (i32, i32) {
    %c0_i32 = arith.constant 0 : i32
    %c0_i32_0 = arith.constant 0 : i32
    return %arg0, %c0_i32 : i32, i32
  }
}

</mosaic_0001>

<llo_original>
// kernel: tpu_custom_call.1
$region0: #{tpu_custom_call.1}
  #allocation0 [shape = 'u32[]', space=smem, size = 0x4, offset = 0x4, fixed_abs, tag = 'smem constant byte address 0x4 - core index']
  #allocation1 [shape = 'u32[144,128]{1,0:T(1,128)}', space=vmem, size = 0x12000, scoped, tag = 'internal scratch']
  %s0 = inlined_call_operand.hbm [shape: bf16[16,32], index: 0, kind: input, shape index: {}]
  %s1 = inlined_call_operand.vmem [shape: f32[1,32], index: 1, kind: input, shape index: {}]
  %s2 = inlined_call_operand.vmem [shape: f32[1,32], index: 2, kind: input, shape index: {}]
  %s3 = inlined_call_operand.hbm [shape: bf16[16,32], index: 3, kind: output, shape index: {}]
  %s4 = sld [smem:[#allocation0]]
  $region26: #{tpu_custom_call.1} parent=0
    _
  %s6 = ssub.s32 1, %s4
  %s7 = scalar_select 0, %s6, %s4
  $region1: #{tpu_custom_call.1} parent=0
    #allocation2 [shape = 'u8[4096]{0}', space=vmem, size = 0x1000, scoped, tag = 'input window, operand 0, single buffered']
    #allocation3 [shape = 's32[1]{0}', space=sflag, size = 0x4, scoped, tag = 'scoped memory for tpu_custom_call.1']
    #allocation4 [shape = 's32[1]{0}', space=sflag, size = 0x4, scoped, tag = 'scoped memory for tpu_custom_call.1']
    #allocation5 [shape = 'u8[4096]{0}', space=vmem, size = 0x1000, scoped, tag = 'output window, operand 0, single buffered']
    %8 = vsyncpa [#allocation3], 0
    %9 = vsyncpa [#allocation4], 0
    // Predicated region
    $region2: #{tpu_custom_call.1} parent=1 // pred_check
      _
    $region3: #{tpu_custom_call.1} parent=1 // pred_check_branch
      %11 = sbr.rel (0) target = $region5
    $region4: #{tpu_custom_call.1} parent=1 // pred_region
      %s13 = ssub.s32 128, 128
      %14 = vsyncadd [#allocation3], %s13
      %s15 = sshll.u32 [#allocation2], 4
      %s16 = int_to_ptr.vmem [resolvable:$true] %s15
      %21 = dma.hbm_to_vmem [thread:$0]  %s0, 128, %s16, [#allocation3], 64, 64, 4
    $region5: #{tpu_custom_call.1} parent=1 // pred_fallthru
      _
    // Predicated region
    $region6: #{tpu_custom_call.1} parent=1 // pred_check
      _
    $region7: #{tpu_custom_call.1} parent=1 // pred_check_branch
      %23 = sbr.rel (0) target = $region9
    $region8: #{tpu_custom_call.1} parent=1 // pred_region
      _
    $region9: #{tpu_custom_call.1} parent=1 // pred_fallthru
      _
    // Predicated region
    $region10: #{tpu_custom_call.1} parent=1 // pred_check
      _
    $region11: #{tpu_custom_call.1} parent=1 // pred_check_branch
      %25 = sbr.rel (0) target = $region13
    $region12: #{tpu_custom_call.1} parent=1 // pred_region
      _
    $region13: #{tpu_custom_call.1} parent=1 // pred_fallthru
      _
    // Predicated region
    $region14: #{tpu_custom_call.1} parent=1 // pred_check
      _
    $region15: #{tpu_custom_call.1} parent=1 // pred_check_branch
      %27 = sbr.rel (0) target = $region17
    $region16: #{tpu_custom_call.1} parent=1 // pred_region
      %28 = dma.done [#allocation3], 128
    $region17: #{tpu_custom_call.1} parent=1 // pred_fallthru
      _
    %v29 = vld [vmem:[#allocation2] sm:$0xf]
    %v30 = vld [vmem:[#allocation2 + $0x4] sm:$0xf]
    %v31 = vunpack.c.l.bf16 %v29
    %v32 = vunpack.c.l.bf16 %v30
    %vm33 = vcmask 261120
    %v34 = vsel %vm33, %v31, 0.0
    %35 = vadd.xlane.f32.xlu0 %v34
    %v36 = vpop.xlane.xlu0 %35
    %v37 = vsel %vm33, %v32, 0.0
    %38 = vadd.xlane.f32.xlu0 %v37
    %v39 = vpop.xlane.xlu0 %38
    %v40 = vrcp.pop 32.0
    %v41 = vmul.f32 %v36, %v40
    %v42 = vmul.f32 %v39, %v40
    %v43 = vsub.f32 %v31, %v41
    %v44 = vsub.f32 %v32, %v42
    %v45 = vmul.f32 %v43, %v43
    %v46 = vmul.f32 %v44, %v44
    %v47 = vsel %vm33, %v45, 0.0
    %48 = vadd.xlane.f32.xlu0 %v47
    %v49 = vpop.xlane.xlu0 %48
    %v50 = vsel %vm33, %v46, 0.0
    %51 = vadd.xlane.f32.xlu0 %v50
    %v52 = vpop.xlane.xlu0 %51
    %v53 = vmul.f32 %v49, %v40
    %v54 = vmul.f32 %v52, %v40
    %v55 = vadd.f32 %v53, 1e-05
    %v56 = vadd.f32 %v54, 1e-05
    %v57 = vrsqrt.pop %v55
    %v58 = vrsqrt.pop %v56
    %v59 = vmul.f32 %v43, %v57
    %v60 = vmul.f32 %v44, %v58
    %v61 = vld [vmem:[%s1] sm:$0x1]
    %v63 = vlaneseq
    %v64 = vshrl.u32 %v63, 7
    %v65 = vsub.s32 0, %v64
    %v66 = vrot.slane %v61, %v65
    %v68 = vmul.f32 %v59, %v66
    %v69 = vmul.f32 %v60, %v66
    %v70 = vld [vmem:[%s2] sm:$0x1]
    %v72 = vlaneseq
    %v73 = vshrl.u32 %v72, 7
    %v74 = vsub.s32 0, %v73
    %v75 = vrot.slane %v70, %v74
    %v77 = vadd.f32 %v68, %v75
    %v78 = vadd.f32 %v69, %v75
    %v79 = vpack.c.bf16 %v78, %v77
    %v81 = vunpack.c.l.b16 %v79
    %v82 = vunpack.c.h.b16 %v79
    %v83 = vpack.c.b16 %v81, %v81
    %v84 = vpack.c.b16 %v82, %v82
    %vm87 = vcmask 257024
    %88 = vst.msk [vmem:[#allocation5] sm:$0xf] %vm87, %v83
    %89 = vst.msk [vmem:[#allocation5 + $0x4] sm:$0xf] %vm87, %v84
    // Predicated region
    $region18: #{tpu_custom_call.1} parent=1 // pred_check
      _
    $region19: #{tpu_custom_call.1} parent=1 // pred_check_branch
      %91 = sbr.rel (0) target = $region21
    $region20: #{tpu_custom_call.1} parent=1 // pred_region
      %s93 = ssub.s32 128, 128
      %94 = vsyncadd [#allocation4], %s93
      %s95 = sshll.u32 [#allocation5], 4
      %s96 = int_to_ptr.vmem [resolvable:$true] %s95
      %101 = dma.vmem_to_hbm [thread:$0]  %s96, 128, %s3, [#allocation4], 64, 64, 4
    $region21: #{tpu_custom_call.1} parent=1 // pred_fallthru
      _
    // Predicated region
    $region22: #{tpu_custom_call.1} parent=1 // pred_check
      _
    $region23: #{tpu_custom_call.1} parent=1 // pred_check_branch
      %103 = sbr.rel (0) target = $region25
    $region24: #{tpu_custom_call.1} parent=1 // pred_region
      %104 = dma.done [#allocation4], 128
    $region25: #{tpu_custom_call.1} parent=1 // pred_fallthru
      _
    %105 = vsyncpa [#allocation3], 1
    %106 = vsyncpa [#allocation4], 1

</llo_original>
